<compile_context>
chip_gen: v5e
topology: v5e:2x2
jax: 0.10.0
libtpu: 0.0.40
codegen_flags: <defaults>
</compile_context>

<pallas_src>
import jax
import jax.numpy as jnp
from jax.experimental import pallas as pl
from jax.experimental.pallas import tpu as pltpu


def _round_up(n: int, m: int) -> int:
    return (n + m - 1) // m * m


def _cdiv(a: int, b: int) -> int:
    return (a + b - 1) // b


_VMEM_LIMIT_BYTES = 48 * 1024 * 1024   # safe on v5e/v6e (128 MiB) and v7x (64 MiB)
_X_TILE_BYTES = 8 * 1024 * 1024        # per-buffer x tile; 16 MiB double-buffered


def _sigmoid(z):
    return 1.0 / (1.0 + jnp.exp(-z))


def _predictor_kernel_fullk(x_ref, w_ref, b_ref, o_ref):
    # x_ref: [TB, D] VMEM, w_ref: [1, D] VMEM (lane-dense row), b_ref: [1,1] SMEM,
    # o_ref: [TB, 1].  Single K step: VPU multiply + XLU lane reduce, fused epilogue.
    acc = jnp.sum(x_ref[...] * w_ref[...], axis=1, keepdims=True)
    z = acc + b_ref[0, 0]
    o_ref[...] = _sigmoid(z).astype(o_ref.dtype)


def _make_ktiled_kernel(d_true: int, tk: int):
    # Fallback for very large D: K tiled, accumulate directly into the resident
    # f32 output block; mask the ragged feature tail in-kernel (no x padding).
    needs_mask = (d_true % tk) != 0

    def kernel(x_ref, w_ref, b_ref, o_ref):
        k = pl.program_id(1)

        @pl.when(k == 0)
        def _():
            o_ref[...] = jnp.zeros_like(o_ref)

        prod = x_ref[...] * w_ref[...]            # (TB, TK), lane-dense
        if needs_mask:
            col = k * tk + jax.lax.broadcasted_iota(jnp.int32, prod.shape, 1)
            prod = jnp.where(col < d_true, prod, 0.0)
        o_ref[...] += jnp.sum(prod, axis=1, keepdims=True)

        @pl.when(k == pl.num_programs(1) - 1)
        def _():
            z = o_ref[...] + b_ref[0, 0]
            o_ref[...] = _sigmoid(z).astype(o_ref.dtype)

    return kernel


def predictor_forward(x: jax.Array, w: jax.Array, b: jax.Array,
                      *, x_tile_bytes: int = _X_TILE_BYTES) -> jax.Array:
    """x: [B, D], w: [D, 1] (or [1, D] / [D]), b: [1]/[1,1] -> sigmoid(x @ w + b): [B, 1]."""
    B, D = x.shape
    x = x.astype(jnp.float32)
    w_row = jnp.reshape(w.astype(jnp.float32), (1, D))    # lane-dense weight row
    b = jnp.reshape(jnp.asarray(b, jnp.float32), (1, 1))  # scalar bias for SMEM

    Dl = _round_up(D, 128)                 # lane-padded feature width in VMEM
    Brows = _round_up(max(B, 1), 8)

    def _compiler(sem):
        return pltpu.CompilerParams(dimension_semantics=sem,
                                    vmem_limit_bytes=_VMEM_LIMIT_BYTES)

    if 8 * Dl * 4 <= x_tile_bytes:
        # ---------- fast path: full-D tiles, single K step ----------
        TB = min(Brows, max(8, (x_tile_bytes // (Dl * 4)) // 8 * 8))
        # v7x megacore: make sure the parallel batch axis has >= 2 tiles.
        if Brows > 8 and _cdiv(B, TB) < 2:
            TB = max(8, _round_up(_cdiv(B, 2), 8))
        grid_b = _cdiv(B, TB)
        return pl.pallas_call(
            _predictor_kernel_fullk,
            out_shape=jax.ShapeDtypeStruct((B, 1), jnp.float32),
            grid_spec=pltpu.PrefetchScalarGridSpec(
                num_scalar_prefetch=0,
                grid=(grid_b,),
                in_specs=[
                    pl.BlockSpec((TB, D), lambda i: (i, 0)),   # x batch tile, full D
                    pl.BlockSpec((1, D), lambda i: (0, 0)),    # weight row, resident
                    pl.BlockSpec(memory_space=pltpu.MemorySpace.SMEM),  # bias scalar
                ],
                out_specs=pl.BlockSpec((TB, 1), lambda i: (i, 0)),
            ),
            compiler_params=_compiler(("parallel",)),
        )(x, w_row, b)

    # ---------- fallback: D too large for one row tile; tile the reduction ----------
    TK = min(_round_up(D, 128), max(128, (x_tile_bytes // (8 * 4)) // 128 * 128))
    TB = min(Brows, max(8, (x_tile_bytes // (TK * 4)) // 8 * 8))
    if Brows > 8 and _cdiv(B, TB) < 2:
        TB = max(8, _round_up(_cdiv(B, 2), 8))
    nk = _cdiv(D, TK)
    return pl.pallas_call(
        _make_ktiled_kernel(D, TK),
        out_shape=jax.ShapeDtypeStruct((B, 1), jnp.float32),
        grid_spec=pltpu.PrefetchScalarGridSpec(
            num_scalar_prefetch=0,
            grid=(_cdiv(B, TB), nk),
            in_specs=[
                pl.BlockSpec((TB, TK), lambda i, k: (i, k)),   # x tile
                pl.BlockSpec((1, TK), lambda i, k: (0, k)),    # weight row chunk
                pl.BlockSpec(memory_space=pltpu.MemorySpace.SMEM),
            ],
            out_specs=pl.BlockSpec((TB, 1), lambda i, k: (i, 0)),  # resident accumulator
        ),
        compiler_params=_compiler(("parallel", "arbitrary")),
    )(x, w_row, b)


if __name__ == "__main__":
    key = jax.random.PRNGKey(0)
    kx, kw, kb, kx2, kx3, kw3 = jax.random.split(key, 6)

    # Small shapes consistent with the module: batch=8, input_dim=32.
    B, D = 8, 32
    x = jax.random.normal(kx, (B, D), dtype=jnp.float32)
    bound = 1.0 / jnp.sqrt(jnp.float32(D))
    w = jax.random.uniform(kw, (D, 1), dtype=jnp.float32, minval=-bound, maxval=bound)
    b = jax.random.uniform(kb, (1, 1), dtype=jnp.float32, minval=-bound, maxval=bound)

    out = predictor_forward(x, w, b)
    jax.block_until_ready(out)
    ref = jax.nn.sigmoid(x @ w + b)
    assert out.shape == (B, 1)
    assert jnp.allclose(out, ref, atol=1e-5, rtol=1e-5)

    # Ragged shapes: partial batch tile + non-128-multiple feature dim (no padding of x).
    B2, D2 = 37, 200
    x2 = jax.random.normal(kx2, (B2, D2), dtype=jnp.float32)
    w2 = jnp.tile(w, (7, 1))[:D2]
    out2 = predictor_forward(x2, w2, b)
    jax.block_until_ready(out2)
    ref2 = jax.nn.sigmoid(x2 @ w2 + b)
    assert out2.shape == (B2, 1)
    assert jnp.allclose(out2, ref2, atol=1e-5, rtol=1e-5)

    # Force the K-tiled fallback (tiny tile budget) to exercise the in-kernel
    # feature-tail mask and the resident-output accumulation across K.
    B3, D3 = 16, 300
    x3 = jax.random.normal(kx3, (B3, D3), dtype=jnp.float32)
    w3 = jax.random.uniform(kw3, (D3, 1), dtype=jnp.float32, minval=-bound, maxval=bound)
    out3 = predictor_forward(x3, w3, b, x_tile_bytes=4096)
    jax.block_until_ready(out3)
    ref3 = jax.nn.sigmoid(x3 @ w3 + b)
    assert out3.shape == (B3, 1)
    assert jnp.allclose(out3, ref3, atol=1e-5, rtol=1e-5)

    print("KERNEL_OK")
</pallas_src>

<mosaic_0001>
module attributes {stable_mosaic.version = 11 : i64} {
  func.func @_predictor_kernel_fullk(%arg0: i32, %arg1: memref<8x32xf32, #tpu.memory_space<vmem>>, %arg2: memref<1x32xf32, #tpu.memory_space<vmem>>, %arg3: memref<1x1xf32, #tpu.memory_space<smem>>, %arg4: memref<8x1xf32, #tpu.memory_space<vmem>>) attributes {dimension_semantics = [#tpu.dimension_semantics<parallel>], iteration_bounds = array<i64: 1>, scalar_prefetch = 0 : i64, scratch_operands = 0 : i64, tpu.core_type = #tpu.core_type<tc>, window_params = [{transform_indices = @transform_0, window_bounds = array<i64: 8, 32>}, {pipeline_mode = #tpu.pipeline_mode<synchronous>, transform_indices = @transform_1, window_bounds = array<i64: 1, 32>}, {transform_indices = @transform_2, window_bounds = array<i64: 1, 1>}, {transform_indices = @transform_3, window_bounds = array<i64: 8, 1>}]} {
    %c0 = arith.constant 0 : index
    %c0_0 = arith.constant 0 : index
    %0 = vector.load %arg1[%c0, %c0_0] : memref<8x32xf32, #tpu.memory_space<vmem>>, vector<8x32xf32>
    %c0_1 = arith.constant 0 : index
    %c0_2 = arith.constant 0 : index
    %1 = vector.load %arg2[%c0_1, %c0_2] : memref<1x32xf32, #tpu.memory_space<vmem>>, vector<1x32xf32>
    %2 = vector.broadcast %1 : vector<1x32xf32> to vector<8x32xf32>
    %3 = arith.mulf %0, %2 : vector<8x32xf32>
    %cst = arith.constant dense<0.000000e+00> : vector<8xf32>
    %4 = vector.multi_reduction <add>, %3, %cst [1] : vector<8x32xf32> to vector<8xf32>
    %5 = vector.shape_cast %4 : vector<8xf32> to vector<8x1xf32>
    %c0_3 = arith.constant 0 : index
    %c0_4 = arith.constant 0 : index
    %6 = memref.load %arg3[%c0_3, %c0_4] : memref<1x1xf32, #tpu.memory_space<smem>>
    %7 = vector.broadcast %6 : f32 to vector<8x1xf32>
    %8 = arith.addf %5, %7 : vector<8x1xf32>
    %cst_5 = arith.constant 0.000000e+00 : f32
    %9 = vector.broadcast %cst_5 : f32 to vector<8x1xf32>
    %10 = arith.subf %9, %8 : vector<8x1xf32>
    %11 = math.exp %10 : vector<8x1xf32>
    %cst_6 = arith.constant 1.000000e+00 : f32
    %12 = vector.broadcast %cst_6 : f32 to vector<8x1xf32>
    %13 = arith.addf %12, %11 : vector<8x1xf32>
    %cst_7 = arith.constant 1.000000e+00 : f32
    %14 = vector.broadcast %cst_7 : f32 to vector<8x1xf32>
    %15 = arith.divf %14, %13 : vector<8x1xf32>
    %c0_8 = arith.constant 0 : index
    %c0_9 = arith.constant 0 : index
    %16 = vector.load %arg4[%c0_8, %c0_9] : memref<8x1xf32, #tpu.memory_space<vmem>>, vector<8x1xf32>
    tpu.vector_store %arg4[%c0_8, %c0_9], %15 {strides = array<i32>} : memref<8x1xf32, #tpu.memory_space<vmem>>, vector<8x1xf32>,
    return
  }
  func.func @transform_0(%arg0: i32) -> (i32, i32) {
    %c0_i32 = arith.constant 0 : i32
    %c0_i32_0 = arith.constant 0 : i32
    return %arg0, %c0_i32 : i32, i32
  }
  func.func @transform_1(%arg0: i32) -> (i32, i32) {
    %c0_i32 = arith.constant 0 : i32
    %c0_i32_0 = arith.constant 0 : i32
    %c0_i32_1 = arith.constant 0 : i32
    return %c0_i32, %c0_i32_0 : i32, i32
  }
  func.func @transform_2(%arg0: i32) -> (i32, i32) {
    %c0_i32 = arith.constant 0 : i32
    %c0_i32_0 = arith.constant 0 : i32
    %c0_i32_1 = arith.constant 0 : i32
    return %c0_i32, %c0_i32_0 : i32, i32
  }
  func.func @transform_3(%arg0: i32) -> (i32, i32) {
    %c0_i32 = arith.constant 0 : i32
    %c0_i32_0 = arith.constant 0 : i32
    return %arg0, %c0_i32 : i32, i32
  }
}

</mosaic_0001>

<llo_original>
// kernel: tpu_custom_call.1
$region0: #{tpu_custom_call.1}
  #allocation0 [shape = 'u32[]', space=smem, size = 0x4, offset = 0x4, fixed_abs, tag = 'smem constant byte address 0x4 - core index']
  #allocation1 [shape = 'u32[72,128]{1,0:T(1,128)}', space=vmem, size = 0x9000, scoped, tag = 'internal scratch']
  #allocation2 [shape = 'f32[1,1]{1,0:T(1,128)S(6)}', space=smem, size = 0x200, scoped, tag = 'scoped memory for tpu_custom_call.1']
  %s0 = inlined_call_operand.hbm [shape: f32[8,32], index: 0, kind: input, shape index: {}]
  %s1 = inlined_call_operand.vmem [shape: f32[1,32], index: 1, kind: input, shape index: {}]
  %s2 = inlined_call_operand.<no memory space> [shape: f32[1,1], index: 2, kind: input, shape index: {}]
  %s3 = inlined_call_operand.vmem [shape: f32[8,1], index: 3, kind: output, shape index: {}]
  %s4 = sld [smem:[#allocation0]]
  $region26: #{tpu_custom_call.1} parent=0
    _
  %s6 = ssub.s32 1, %s4
  %s7 = scalar_select 0, %s6, %s4
  %8 = sst [smem:[#allocation2]] %s2
  $region1: #{tpu_custom_call.1} parent=0
    #allocation3 [shape = 'u8[4096]{0}', space=vmem, size = 0x1000, scoped, tag = 'input window, operand 0, single buffered']
    #allocation4 [shape = 's32[1]{0}', space=sflag, size = 0x4, scoped, tag = 'scoped memory for tpu_custom_call.1']
    %9 = vsyncpa [#allocation4], 0
    // Predicated region
    $region2: #{tpu_custom_call.1} parent=1 // pred_check
      _
    $region3: #{tpu_custom_call.1} parent=1 // pred_check_branch
      %11 = sbr.rel (0) target = $region5
    $region4: #{tpu_custom_call.1} parent=1 // pred_region
      %13 = vsyncadd [#allocation4], 0
      %s15 = sshll.u32 %s0, 4
      %s16 = int_to_ptr.hbm [resolvable:$true] %s15
      %s17 = sshll.u32 [#allocation3], 4
      %s18 = int_to_ptr.vmem [resolvable:$true] %s17
      %20 = dma.hbm_to_vmem [thread:$0]  %s16, 128, %s18, [#allocation4]
    $region5: #{tpu_custom_call.1} parent=1 // pred_fallthru
      _
    // Predicated region
    $region6: #{tpu_custom_call.1} parent=1 // pred_check
      _
    $region7: #{tpu_custom_call.1} parent=1 // pred_check_branch
      %22 = sbr.rel (0) target = $region9
    $region8: #{tpu_custom_call.1} parent=1 // pred_region
      _
    $region9: #{tpu_custom_call.1} parent=1 // pred_fallthru
      _
    // Predicated region
    $region10: #{tpu_custom_call.1} parent=1 // pred_check
      _
    $region11: #{tpu_custom_call.1} parent=1 // pred_check_branch
      %24 = sbr.rel (0) target = $region13
    $region12: #{tpu_custom_call.1} parent=1 // pred_region
      _
    $region13: #{tpu_custom_call.1} parent=1 // pred_fallthru
      _
    // Predicated region
    $region14: #{tpu_custom_call.1} parent=1 // pred_check
      _
    $region15: #{tpu_custom_call.1} parent=1 // pred_check_branch
      %26 = sbr.rel (0) target = $region17
    $region16: #{tpu_custom_call.1} parent=1 // pred_region
      %28 = dma.done [#allocation4], 128
    $region17: #{tpu_custom_call.1} parent=1 // pred_fallthru
      _
    %v29 = vld [vmem:[#allocation3] sm:$0xff]
    %v30 = vld [vmem:[%s1] sm:$0x1]
    %v32 = vperm.slane %v30, 0
    %v34 = vmul.f32 %v29, %v32
    %vm35 = vcmask 261120
    %v36 = vsel %vm35, %v34, 0.0
    %37 = vadd.xlane.f32.xlu0 %v36
    %v38 = vpop.xlane.xlu0 %37
    %s39 = sld [smem:[#allocation2]]
    %v40 = vstv %s39
    %v41 = vadd.f32 %v38, %v40
    %v42 = vsub.f32 0.0, %v41
    %v43 = vmul.f32 %v42, 1.442695
    %v44 = vpow.pop %v43
    %v45 = vadd.f32 %v44, 1.0
    %v46 = vrcp.pop %v45
    %v47 = vmul.f32 %v45, %v46
    %v48 = vsub.f32 1.0, %v47
    %v49 = vmul.f32 %v46, %v48
    %v50 = vadd.f32 %v46, %v49
    %vm51 = vweird.f32 %v45
    %vm52 = vweird.f32 %v46
    %vm53 = vmor %vm51, %vm52
    %v54 = vsel %vm53, %v46, %v50
    %v55 = vand.u32 2147483647, %v45
    %vm56 = vcmp.eq.f32.partialorder %v55, 8.507059e+37
    %v57 = vand.u32 %v45, 2147483648
    %v58 = vor.u32 1.1754944e-38, %v57
    %v59 = vsel %vm56, %v58, %v54
    %v60 = vmul.f32 1.0, %v59
    %vm61 = vcmask 7168
    %62 = vst.msk [vmem:[%s3] sm:$0xff] %vm61, %v60
    // Predicated region
    $region18: #{tpu_custom_call.1} parent=1 // pred_check
      _
    $region19: #{tpu_custom_call.1} parent=1 // pred_check_branch
      %64 = sbr.rel (0) target = $region21
    $region20: #{tpu_custom_call.1} parent=1 // pred_region
      _
    $region21: #{tpu_custom_call.1} parent=1 // pred_fallthru
      _
    // Predicated region
    $region22: #{tpu_custom_call.1} parent=1 // pred_check
      _
    $region23: #{tpu_custom_call.1} parent=1 // pred_check_branch
      %66 = sbr.rel (0) target = $region25
    $region24: #{tpu_custom_call.1} parent=1 // pred_region
      _
    $region25: #{tpu_custom_call.1} parent=1 // pred_fallthru
      _
    %67 = vsyncpa [#allocation4], 1

</llo_original>
